<compile_context>
chip_gen: v7x
topology: tpu7x:2x2x1
jax: 0.10.0
libtpu: 0.0.40
codegen_flags: <defaults>
</compile_context>

<pallas_src>
import math

import jax
import jax.numpy as jnp
from jax import lax
from jax.experimental import pallas as pl
from jax.experimental.pallas import tpu as pltpu


def _make_ds2_omega_kernel(d: int):
    """Kernel factory; `d` is the true (unpadded) size of the last dim."""

    def kernel(x_ref, o_ref):
        # x_ref: (TB, Dp) with lanes >= d zero-padded.  o_ref: (TB, Dp).
        x = x_ref[...]
        xf = x.astype(jnp.float32)

        # Row sum in f32.  Padding lanes are zero, so summing all Dp lanes
        # equals summing the first d lanes.
        s = jnp.sum(xf, axis=-1, keepdims=True)          # (TB, 1)
        omega = 1.0 - s                                  # (TB, 1)

        # Place: lane < d -> x, lane == d -> omega, lane > d -> 0 (sliced off).
        lane = lax.broadcasted_iota(jnp.int32, xf.shape, dimension=1)
        out = jnp.where(lane < d, xf, jnp.where(lane == d, omega, 0.0))
        o_ref[...] = out.astype(o_ref.dtype)

    return kernel


def ds2_omega_forward(x, *, row_tile: int = 512):
    orig_shape = x.shape
    d = orig_shape[-1]
    rows = math.prod(orig_shape[:-1]) if len(orig_shape) > 1 else 1

    # Lane-dense padded widths (multiple of 128) for both input and output.
    dp = pl.cdiv(d + 1, 128) * 128

    # Row tiling: single full block for small inputs, 512-row tiles otherwise.
    if rows > row_tile:
        padded_rows = pl.cdiv(rows, row_tile) * row_tile
        tb = row_tile
    else:
        padded_rows = pl.cdiv(rows, 8) * 8
        tb = padded_rows

    x2 = x.reshape(rows, d)
    x2 = jnp.pad(x2, ((0, padded_rows - rows), (0, dp - d)))

    out = pl.pallas_call(
        _make_ds2_omega_kernel(d),
        out_shape=jax.ShapeDtypeStruct((padded_rows, dp), x.dtype),
        grid=(padded_rows // tb,),
        in_specs=[pl.BlockSpec((tb, dp), lambda i: (i, 0))],
        out_specs=pl.BlockSpec((tb, dp), lambda i: (i, 0)),
        compiler_params=pltpu.CompilerParams(
            dimension_semantics=("parallel",),
        ),
    )(x2)

    out = out[:rows, : d + 1]
    return out.reshape(*orig_shape[:-1], d + 1)


if __name__ == "__main__":
    # Small shapes consistent with DS2_omega in a DS classification head:
    # x = per-prototype mass assignments, shape (batch, prototypes, num_class).
    batch, prototypes, num_class = 4, 8, 16

    key = jax.random.PRNGKey(0)
    # Non-negative "mass-like" values so the omega column is meaningful.
    x = jax.random.uniform(key, (batch, prototypes, num_class),
                           dtype=jnp.float32) * (1.0 / num_class)

    out = ds2_omega_forward(x)
    out = jax.block_until_ready(out)

    # Pure-JAX reference (same math as the PyTorch forward).
    ref = jnp.concatenate(
        [x, 1.0 - jnp.sum(x, axis=-1, keepdims=True)], axis=-1)

    assert out.shape == (batch, prototypes, num_class + 1), out.shape
    assert jnp.allclose(out, ref, atol=1e-5, rtol=1e-5)

    print("KERNEL_OK")
</pallas_src>

<mosaic_0001>
module attributes {stable_mosaic.version = 11 : i64} {
  func.func @kernel(%arg0: i32, %arg1: memref<32x128xf32, #tpu.memory_space<vmem>>, %arg2: memref<32x128xf32, #tpu.memory_space<vmem>>) attributes {dimension_semantics = [#tpu.dimension_semantics<parallel>], iteration_bounds = array<i64: 1>, scalar_prefetch = 0 : i64, scratch_operands = 0 : i64, tpu.core_type = #tpu.core_type<tc>, window_params = [{transform_indices = @transform_0, window_bounds = array<i64: 32, 128>}, {transform_indices = @transform_1, window_bounds = array<i64: 32, 128>}]} {
    %c0 = arith.constant 0 : index
    %c0_0 = arith.constant 0 : index
    %0 = vector.load %arg1[%c0, %c0_0] : memref<32x128xf32, #tpu.memory_space<vmem>>, vector<32x128xf32>
    %cst = arith.constant dense<0.000000e+00> : vector<32xf32>
    %1 = vector.multi_reduction <add>, %0, %cst [1] : vector<32x128xf32> to vector<32xf32>
    %2 = vector.shape_cast %1 : vector<32xf32> to vector<32x1xf32>
    %cst_1 = arith.constant 1.000000e+00 : f32
    %3 = vector.broadcast %cst_1 : f32 to vector<32x1xf32>
    %4 = arith.subf %3, %2 : vector<32x1xf32>
    %5 = tpu.iota {dimensions = array<i32: 1>} : vector<32x128xi32>
    %c16_i32 = arith.constant 16 : i32
    %6 = vector.broadcast %c16_i32 : i32 to vector<32x128xi32>
    %7 = arith.cmpi slt, %5, %6 : vector<32x128xi32>
    %c16_i32_2 = arith.constant 16 : i32
    %8 = vector.broadcast %c16_i32_2 : i32 to vector<32x128xi32>
    %9 = arith.cmpi eq, %5, %8 : vector<32x128xi32>
    %cst_3 = arith.constant 0.000000e+00 : f32
    %10 = vector.shape_cast %4 : vector<32x1xf32> to vector<32x1xf32>
    %11 = vector.broadcast %10 : vector<32x1xf32> to vector<32x128xf32>
    %12 = vector.broadcast %cst_3 : f32 to vector<32x128xf32>
    %13 = arith.select %9, %11, %12 : vector<32x128xi1>, vector<32x128xf32>
    %14 = arith.select %7, %0, %13 : vector<32x128xi1>, vector<32x128xf32>
    %c0_4 = arith.constant 0 : index
    %c0_5 = arith.constant 0 : index
    %15 = vector.load %arg2[%c0_4, %c0_5] : memref<32x128xf32, #tpu.memory_space<vmem>>, vector<32x128xf32>
    tpu.vector_store %arg2[%c0_4, %c0_5], %14 {strides = array<i32>} : memref<32x128xf32, #tpu.memory_space<vmem>>, vector<32x128xf32>,
    return
  }
  func.func @transform_0(%arg0: i32) -> (i32, i32) {
    %c0_i32 = arith.constant 0 : i32
    %c0_i32_0 = arith.constant 0 : i32
    return %arg0, %c0_i32 : i32, i32
  }
  func.func @transform_1(%arg0: i32) -> (i32, i32) {
    %c0_i32 = arith.constant 0 : i32
    %c0_i32_0 = arith.constant 0 : i32
    return %arg0, %c0_i32 : i32, i32
  }
}

</mosaic_0001>

<llo_original>
// kernel: tpu_custom_call.1
$region0: #{tpu_custom_call.1}
  #allocation0 [shape = 'u32[]', space=smem, size = 0x4, offset = 0x4, fixed_abs, tag = 'smem constant byte address 0x4 - core index']
  #allocation1 [shape = 'u32[144,128]{1,0:T(1,128)}', space=vmem, size = 0x12000, scoped, tag = 'internal scratch']
  %s0 = inlined_call_operand.hbm [shape: f32[32,128], index: 0, kind: input, shape index: {}]
  %s1 = inlined_call_operand.hbm [shape: f32[32,128], index: 1, kind: output, shape index: {}]
  %s2 = sld [smem:[#allocation0]]
  $region18: #{tpu_custom_call.1} parent=0
    _
  %s4 = ssub.s32 1, %s2
  %s5 = scalar_select 0, %s4, %s2
  $region1: #{tpu_custom_call.1} parent=0
    #allocation2 [shape = 'u8[16384]{0}', space=vmem, size = 0x4000, scoped, tag = 'input window, operand 0, single buffered']
    #allocation3 [shape = 's32[1]{0}', space=sflag, size = 0x4, scoped, tag = 'scoped memory for tpu_custom_call.1']
    #allocation4 [shape = 's32[1]{0}', space=sflag, size = 0x4, scoped, tag = 'scoped memory for tpu_custom_call.1']
    #allocation5 [shape = 'u8[16384]{0}', space=vmem, size = 0x4000, scoped, tag = 'output window, operand 0, single buffered']
    %6 = vsyncpa [#allocation3], 0
    %7 = vsyncpa [#allocation4], 0
    // Predicated region
    $region2: #{tpu_custom_call.1} parent=1 // pred_check
      _
    $region3: #{tpu_custom_call.1} parent=1 // pred_check_branch
      %9 = sbr.rel (0) target = $region5
    $region4: #{tpu_custom_call.1} parent=1 // pred_region
      %s11 = ssub.s32 512, 512
      %12 = vsyncadd [#allocation3], %s11
      %s13 = sshll.u32 [#allocation2], 4
      %s14 = int_to_ptr.vmem [resolvable:$true] %s13
      %19 = dma.hbm_to_vmem [thread:$0]  %s0, 512, %s14, [#allocation3], 128, 128, 8
    $region5: #{tpu_custom_call.1} parent=1 // pred_fallthru
      _
    // Predicated region
    $region6: #{tpu_custom_call.1} parent=1 // pred_check
      _
    $region7: #{tpu_custom_call.1} parent=1 // pred_check_branch
      %21 = sbr.rel (0) target = $region9
    $region8: #{tpu_custom_call.1} parent=1 // pred_region
      %22 = dma.done [#allocation3], 512
    $region9: #{tpu_custom_call.1} parent=1 // pred_fallthru
      _
    %v23 = vld [vmem:[#allocation2] sm:$0xff]
    %v24 = vld [vmem:[#allocation2 + $0x8] sm:$0xff]
    %v25 = vld [vmem:[#allocation2 + $0x10] sm:$0xff]
    %v26 = vld [vmem:[#allocation2 + $0x18] sm:$0xff]
    %27 = vadd.xlane.f32.xlu0 %v23
    %v28 = vpop.xlane.xlu0 %27
    %29 = vadd.xlane.f32.xlu0 %v24
    %v30 = vpop.xlane.xlu0 %29
    %31 = vadd.xlane.f32.xlu0 %v25
    %v32 = vpop.xlane.xlu0 %31
    %33 = vadd.xlane.f32.xlu0 %v26
    %v34 = vpop.xlane.xlu0 %33
    %v35 = vsub.f32 1.0, %v28
    %v36 = vsub.f32 1.0, %v30
    %v37 = vsub.f32 1.0, %v32
    %v38 = vsub.f32 1.0, %v34
    %v39 = vlaneseq
    %v40 = vand.u32 %v39, 127
    %vm41 = vcmp.lt.s32.totalorder %v40, 16
    %vm42 = vcmp.eq.s32.totalorder %v40, 16
    %v43 = vsel %vm42, %v35, 0.0
    %v44 = vsel %vm42, %v36, 0.0
    %v45 = vsel %vm42, %v37, 0.0
    %v46 = vsel %vm42, %v38, 0.0
    %v47 = vsel %vm41, %v23, %v43
    %v48 = vsel %vm41, %v24, %v44
    %v49 = vsel %vm41, %v25, %v45
    %v50 = vsel %vm41, %v26, %v46
    %51 = vst [vmem:[#allocation5] sm:$0xff] %v47
    %52 = vst [vmem:[#allocation5 + $0x8] sm:$0xff] %v48
    %53 = vst [vmem:[#allocation5 + $0x10] sm:$0xff] %v49
    %54 = vst [vmem:[#allocation5 + $0x18] sm:$0xff] %v50
    // Predicated region
    $region10: #{tpu_custom_call.1} parent=1 // pred_check
      _
    $region11: #{tpu_custom_call.1} parent=1 // pred_check_branch
      %56 = sbr.rel (0) target = $region13
    $region12: #{tpu_custom_call.1} parent=1 // pred_region
      %s58 = ssub.s32 512, 512
      %59 = vsyncadd [#allocation4], %s58
      %s60 = sshll.u32 [#allocation5], 4
      %s61 = int_to_ptr.vmem [resolvable:$true] %s60
      %66 = dma.vmem_to_hbm [thread:$0]  %s61, 512, %s1, [#allocation4], 128, 128, 8
    $region13: #{tpu_custom_call.1} parent=1 // pred_fallthru
      _
    // Predicated region
    $region14: #{tpu_custom_call.1} parent=1 // pred_check
      _
    $region15: #{tpu_custom_call.1} parent=1 // pred_check_branch
      %68 = sbr.rel (0) target = $region17
    $region16: #{tpu_custom_call.1} parent=1 // pred_region
      %69 = dma.done [#allocation4], 512
    $region17: #{tpu_custom_call.1} parent=1 // pred_fallthru
      _
    %70 = vsyncpa [#allocation3], 1
    %71 = vsyncpa [#allocation4], 1

</llo_original>
